<compile_context>
chip_gen: v7x
topology: tpu7x:2x2x1
jax: 0.10.0
libtpu: 0.0.40
codegen_flags: <defaults>
</compile_context>

<pallas_src>
import functools

import jax
import jax.numpy as jnp
from jax import lax
from jax.experimental import pallas as pl
from jax.experimental.pallas import tpu as pltpu

EPS = 1e-5        # nn.InstanceNorm2d default eps
NEG_SLOPE = 0.05  # LeakyReLU slope from the module


def _conv_in_lrelu_kernel(mask_ref, x_ref, w_ref, o_ref, *scratch,
                          H, W, KH, KW, pad, compute_dtype, use_patch):
    """One grid step processes ONE image (batch folded into the grid).

    mask_ref: (KH*KW, 1, H*W) f32   0/1 boundary masks, one per tap (constant block)
    x_ref:    (Cin, H*W)      f32   lane-dense flattened NCHW input image (VMEM)
    w_ref:    use_patch:  (Cout, KH*KW*Cin)  flattened weight, (kh,kw,ci) order
              else:       (KH*KW, Cout, Cin) per-tap weight slabs
    o_ref:    (Cout, H*W)           lane-dense flattened NCHW output (VMEM)
    scratch:  use_patch: (patch_ref,) with patch_ref (KH*KW*Cin, H*W) in compute_dtype
    """
    HW = H * W
    Cin = x_ref.shape[0]

    # Roll/mask stay in f32 (native VPU width everywhere, incl. v5e); cast to the MXU
    # operand dtype only at the last moment (patch store / matmul operand).
    x = x_ref[...].astype(jnp.float32)                          # (Cin, HW)

    def tap_value(kh, kw):
        dh, dw = kh - pad, kw - pad
        t = kh * KW + kw
        if dh == 0 and dw == 0:
            v = x                                               # center tap: no roll/mask
        else:
            s = dh * W + dw                                     # static flat shift
            shifted = pltpu.roll(x, shift=(-s) % HW, axis=1)    # XLU lane rotation
            v = shifted * mask_ref[t]                           # (1,HW) mask broadcast
        return v.astype(compute_dtype)

    if use_patch:
        # Cin % 8 == 0: aligned slab stores into the im2col scratch, ONE big-K matmul.
        patch_ref = scratch[0]
        for kh in range(KH):
            for kw in range(KW):
                t = kh * KW + kw
                patch_ref[pl.ds(t * Cin, Cin), :] = tap_value(kh, kw)
        acc = jnp.dot(w_ref[...], patch_ref[...],
                      preferred_element_type=jnp.float32)       # (Cout, HW) f32
    else:
        # Cin % 8 != 0: skip the scratch; accumulate 9 per-tap MXU matmuls in registers.
        Cout = w_ref.shape[1]
        acc = jnp.zeros((Cout, HW), jnp.float32)
        for kh in range(KH):
            for kw in range(KW):
                t = kh * KW + kw
                acc = acc + jnp.dot(w_ref[t], tap_value(kh, kw),
                                    preferred_element_type=jnp.float32)

    # ---- InstanceNorm2d: per-channel stats over the lane axis (H*W) ----
    # Two-pass biased variance (matches PyTorch), avoids E[x^2]-mean^2 cancellation.
    mean = jnp.mean(acc, axis=1, keepdims=True)                 # (Cout, 1)
    cen = acc - mean
    var = jnp.mean(cen * cen, axis=1, keepdims=True)
    y = cen * lax.rsqrt(var + EPS)                              # rsqrt -> EUP slot

    # ---- LeakyReLU(0.05) ----
    y = jnp.where(y > 0, y, NEG_SLOPE * y)

    # Lane-dense store: last dim = H*W (multiple of 128) -> unmasked vst.
    o_ref[...] = y.astype(o_ref.dtype)


def _pick_vmem_limit(required_bytes):
    """Derive vmem_limit_bytes from the real footprint, clamped to device capacity."""
    cap = 128 * 1024 * 1024
    try:
        cap = int(pltpu.get_tpu_info().vmem_capacity_bytes)
    except Exception:
        pass
    want = max(32 << 20, int(required_bytes * 1.5) + (4 << 20))
    return int(min(want, cap))


@functools.partial(jax.jit, static_argnames=("pad", "compute_dtype", "out_dtype"))
def conv_bn_relu_pallas(x_nchw, weight_oihw, *, pad=1,
                        compute_dtype=jnp.bfloat16, out_dtype=jnp.float32):
    """Forward pass of ConvBnReLU. Input/weight follow PyTorch NCHW / OIHW.

    compute_dtype: dtype of the MXU operands (patches / weights); f32 accumulation is
    always used. bf16 is the default (v6e/v7x MXU-native, halves patch/weight VMEM);
    pass jnp.float32 for bit-tight comparisons against an f32 reference.
    """
    N, Cin, H, W = x_nchw.shape
    Cout, Cin_w, KH, KW = weight_oihw.shape
    assert Cin == Cin_w
    assert KH == 2 * pad + 1 and KW == 2 * pad + 1, "only 'same' stride-1 conv supported"

    HW = H * W
    K = KH * KW * Cin
    use_patch = (Cin % 8 == 0)   # aligned im2col slabs only when Cin fills sublane tiles

    # Free reshape (row-major contiguous): NCHW -> lane-dense (N, Cin, H*W), kept f32.
    x_flat = x_nchw.reshape(N, Cin, HW).astype(jnp.float32)

    # Weight reorder is tiny; pre-cast to the MXU operand dtype in the wrapper.
    if use_patch:
        # (Cout, Cin, KH, KW) -> (Cout, KH*KW*Cin), matching patch row order (kh, kw, ci).
        w_prep = jnp.transpose(weight_oihw, (0, 2, 3, 1)).reshape(Cout, K)
        w_spec = pl.BlockSpec((Cout, K), lambda n: (0, 0))
    else:
        # (Cout, Cin, KH, KW) -> (KH*KW, Cout, Cin): per-tap weight slabs.
        w_prep = jnp.transpose(weight_oihw, (2, 3, 0, 1)).reshape(KH * KW, Cout, Cin)
        w_spec = pl.BlockSpec((KH * KW, Cout, Cin), lambda n: (0, 0, 0))
    w_prep = w_prep.astype(compute_dtype)

    # Precompute the 9 boundary masks once (hoisted out of the kernel entirely).
    lane = jnp.arange(HW, dtype=jnp.int32)
    row, col = lane // W, lane % W
    masks = []
    for kh in range(KH):
        dh = kh - pad
        for kw in range(KW):
            dw = kw - pad
            masks.append((row >= -dh) & (row < H - dh) & (col >= -dw) & (col < W - dw))
    mask = jnp.stack(masks).astype(jnp.float32).reshape(KH * KW, 1, HW)

    kernel = functools.partial(_conv_in_lrelu_kernel,
                               H=H, W=W, KH=KH, KW=KW, pad=pad,
                               compute_dtype=compute_dtype, use_patch=use_patch)

    # VMEM accounting: double-buffered in/out blocks + mask + weight + patch scratch.
    c_item = jnp.dtype(compute_dtype).itemsize
    o_item = jnp.dtype(out_dtype).itemsize
    required = (2 * Cin * HW * 4 + 2 * Cout * HW * o_item
                + 2 * KH * KW * HW * 4 + 2 * Cout * K * c_item
                + (K * HW * c_item if use_patch else 0))

    scratch_shapes = [pltpu.VMEM((K, HW), compute_dtype)] if use_patch else []

    out_flat = pl.pallas_call(
        kernel,
        out_shape=jax.ShapeDtypeStruct((N, Cout, HW), out_dtype),
        grid=(N,),
        in_specs=[
            pl.BlockSpec((KH * KW, 1, HW), lambda n: (0, 0, 0)),   # masks (constant block)
            pl.BlockSpec((None, Cin, HW), lambda n: (n, 0, 0)),    # one image per step
            w_spec,                                                # weight (constant block)
        ],
        out_specs=pl.BlockSpec((None, Cout, HW), lambda n: (n, 0, 0)),
        scratch_shapes=scratch_shapes,
        compiler_params=pltpu.CompilerParams(
            dimension_semantics=("parallel",),
            vmem_limit_bytes=_pick_vmem_limit(required),
        ),
    )(mask, x_flat, w_prep)

    # Free reshape back to NCHW.
    return out_flat.reshape(N, Cout, H, W)


def _reference(x_nchw, weight_oihw, *, pad=1):
    """Pure-JAX reference mirroring the PyTorch module."""
    y = lax.conv_general_dilated(
        x_nchw, weight_oihw,
        window_strides=(1, 1),
        padding=[(pad, pad), (pad, pad)],
        dimension_numbers=("NCHW", "OIHW", "NCHW"),
    )
    mean = jnp.mean(y, axis=(2, 3), keepdims=True)
    var = jnp.mean((y - mean) ** 2, axis=(2, 3), keepdims=True)
    y = (y - mean) * lax.rsqrt(var + EPS)
    return jnp.where(y > 0, y, NEG_SLOPE * y)


if __name__ == "__main__":
    key = jax.random.PRNGKey(0)
    kx, kw1, kw2 = jax.random.split(key, 3)

    # ---- Path A: Cin % 8 != 0 (no patch scratch, per-tap MXU accumulate) ----
    N, Cin, Cout, H, W = 2, 4, 8, 16, 16
    x = jax.random.normal(kx, (N, Cin, H, W), dtype=jnp.float32)
    fan_in = Cin * 3 * 3
    bound = 1.0 / (fan_in ** 0.5)
    w_a = jax.random.uniform(kw1, (Cout, Cin, 3, 3), dtype=jnp.float32,
                             minval=-bound, maxval=bound)

    out_f32 = jax.block_until_ready(
        conv_bn_relu_pallas(x, w_a, compute_dtype=jnp.float32))
    ref_a = _reference(x, w_a)
    assert out_f32.shape == (N, Cout, H, W)
    assert jnp.allclose(out_f32, ref_a, rtol=1e-4, atol=1e-5), "f32 path mismatch"

    # Default bf16 MXU-operand path: compare against an operand-quantized f32 reference.
    out_bf16 = jax.block_until_ready(conv_bn_relu_pallas(x, w_a))
    x_q = x.astype(jnp.bfloat16).astype(jnp.float32)
    w_q = w_a.astype(jnp.bfloat16).astype(jnp.float32)
    ref_q = _reference(x_q, w_q)
    assert jnp.allclose(out_bf16, ref_q, rtol=2e-2, atol=2e-2), "bf16 path mismatch"

    # ---- Path B: Cin % 8 == 0 (im2col patch scratch, single big-K matmul) ----
    Cin_b, Cout_b = 8, 16
    xb = jax.random.normal(kx, (N, Cin_b, H, W), dtype=jnp.float32)
    bound_b = 1.0 / ((Cin_b * 9) ** 0.5)
    w_b = jax.random.uniform(kw2, (Cout_b, Cin_b, 3, 3), dtype=jnp.float32,
                             minval=-bound_b, maxval=bound_b)
    out_b = jax.block_until_ready(
        conv_bn_relu_pallas(xb, w_b, compute_dtype=jnp.float32))
    ref_b = _reference(xb, w_b)
    assert out_b.shape == (N, Cout_b, H, W)
    assert jnp.allclose(out_b, ref_b, rtol=1e-4, atol=1e-5), "scratch path mismatch"

    print("KERNEL_OK")
</pallas_src>

<mosaic_0001>
module attributes {stable_mosaic.version = 11 : i64} {
  func.func @_conv_in_lrelu_kernel(%arg0: i32, %arg1: memref<9x1x256xf32, #tpu.memory_space<vmem>>, %arg2: memref<1x4x256xf32, #tpu.memory_space<vmem>>, %arg3: memref<9x8x4xf32, #tpu.memory_space<vmem>>, %arg4: memref<1x8x256xf32, #tpu.memory_space<vmem>>) attributes {dimension_semantics = [#tpu.dimension_semantics<parallel>], iteration_bounds = array<i64: 2>, scalar_prefetch = 0 : i64, scratch_operands = 0 : i64, tpu.core_type = #tpu.core_type<tc>, window_params = [{pipeline_mode = #tpu.pipeline_mode<synchronous>, transform_indices = @transform_0, window_bounds = array<i64: 9, 1, 256>}, {transform_indices = @transform_1, window_bounds = array<i64: 1, 4, 256>}, {pipeline_mode = #tpu.pipeline_mode<synchronous>, transform_indices = @transform_2, window_bounds = array<i64: 9, 8, 4>}, {transform_indices = @transform_3, window_bounds = array<i64: 1, 8, 256>}]} {
    %c0 = arith.constant 0 : index
    %c0_0 = arith.constant 0 : index
    %c0_1 = arith.constant 0 : index
    %0 = vector.load %arg2[%c0, %c0_0, %c0_1] : memref<1x4x256xf32, #tpu.memory_space<vmem>>, vector<1x4x256xf32>
    %1 = vector.shape_cast %0 : vector<1x4x256xf32> to vector<4x256xf32>
    %cst = arith.constant 0.000000e+00 : f32
    %2 = vector.broadcast %cst : f32 to vector<8x256xf32>
    %c0_2 = arith.constant 0 : index
    %c0_3 = arith.constant 0 : index
    %c0_4 = arith.constant 0 : index
    %3 = vector.load %arg3[%c0_2, %c0_3, %c0_4] : memref<9x8x4xf32, #tpu.memory_space<vmem>>, vector<1x8x4xf32>
    %4 = vector.shape_cast %3 : vector<1x8x4xf32> to vector<8x4xf32>
    %c17_i32 = arith.constant 17 : i32
    %5 = tpu.dynamic_rotate %1 by %c17_i32 dim 1 : vector<4x256xf32>, i32 -> vector<4x256xf32>
    %c0_5 = arith.constant 0 : index
    %c0_6 = arith.constant 0 : index
    %c0_7 = arith.constant 0 : index
    %6 = vector.load %arg1[%c0_5, %c0_6, %c0_7] : memref<9x1x256xf32, #tpu.memory_space<vmem>>, vector<1x1x256xf32>
    %7 = vector.shape_cast %6 : vector<1x1x256xf32> to vector<1x256xf32>
    %8 = vector.broadcast %7 : vector<1x256xf32> to vector<4x256xf32>
    %9 = arith.mulf %5, %8 : vector<4x256xf32>
    %cst_8 = arith.constant dense<0.000000e+00> : vector<8x256xf32>
    %10 = tpu.matmul %4, %9, %cst_8 {dimension_numbers = #tpu.dot_dimension_numbers<[1], [0], [0], [1], [0, 0, 1, 1], [], []>} : vector<8x4xf32>, vector<4x256xf32>, vector<8x256xf32> -> vector<8x256xf32>
    %11 = arith.addf %2, %10 : vector<8x256xf32>
    %c1 = arith.constant 1 : index
    %c0_9 = arith.constant 0 : index
    %c0_10 = arith.constant 0 : index
    %12 = vector.load %arg3[%c1, %c0_9, %c0_10] : memref<9x8x4xf32, #tpu.memory_space<vmem>>, vector<1x8x4xf32>
    %13 = vector.shape_cast %12 : vector<1x8x4xf32> to vector<8x4xf32>
    %c16_i32 = arith.constant 16 : i32
    %14 = tpu.dynamic_rotate %1 by %c16_i32 dim 1 : vector<4x256xf32>, i32 -> vector<4x256xf32>
    %c1_11 = arith.constant 1 : index
    %c0_12 = arith.constant 0 : index
    %c0_13 = arith.constant 0 : index
    %15 = vector.load %arg1[%c1_11, %c0_12, %c0_13] : memref<9x1x256xf32, #tpu.memory_space<vmem>>, vector<1x1x256xf32>
    %16 = vector.shape_cast %15 : vector<1x1x256xf32> to vector<1x256xf32>
    %17 = vector.broadcast %16 : vector<1x256xf32> to vector<4x256xf32>
    %18 = arith.mulf %14, %17 : vector<4x256xf32>
    %cst_14 = arith.constant dense<0.000000e+00> : vector<8x256xf32>
    %19 = tpu.matmul %13, %18, %cst_14 {dimension_numbers = #tpu.dot_dimension_numbers<[1], [0], [0], [1], [0, 0, 1, 1], [], []>} : vector<8x4xf32>, vector<4x256xf32>, vector<8x256xf32> -> vector<8x256xf32>
    %20 = arith.addf %11, %19 : vector<8x256xf32>
    %c2 = arith.constant 2 : index
    %c0_15 = arith.constant 0 : index
    %c0_16 = arith.constant 0 : index
    %21 = vector.load %arg3[%c2, %c0_15, %c0_16] : memref<9x8x4xf32, #tpu.memory_space<vmem>>, vector<1x8x4xf32>
    %22 = vector.shape_cast %21 : vector<1x8x4xf32> to vector<8x4xf32>
    %c15_i32 = arith.constant 15 : i32
    %23 = tpu.dynamic_rotate %1 by %c15_i32 dim 1 : vector<4x256xf32>, i32 -> vector<4x256xf32>
    %c2_17 = arith.constant 2 : index
    %c0_18 = arith.constant 0 : index
    %c0_19 = arith.constant 0 : index
    %24 = vector.load %arg1[%c2_17, %c0_18, %c0_19] : memref<9x1x256xf32, #tpu.memory_space<vmem>>, vector<1x1x256xf32>
    %25 = vector.shape_cast %24 : vector<1x1x256xf32> to vector<1x256xf32>
    %26 = vector.broadcast %25 : vector<1x256xf32> to vector<4x256xf32>
    %27 = arith.mulf %23, %26 : vector<4x256xf32>
    %cst_20 = arith.constant dense<0.000000e+00> : vector<8x256xf32>
    %28 = tpu.matmul %22, %27, %cst_20 {dimension_numbers = #tpu.dot_dimension_numbers<[1], [0], [0], [1], [0, 0, 1, 1], [], []>} : vector<8x4xf32>, vector<4x256xf32>, vector<8x256xf32> -> vector<8x256xf32>
    %29 = arith.addf %20, %28 : vector<8x256xf32>
    %c3 = arith.constant 3 : index
    %c0_21 = arith.constant 0 : index
    %c0_22 = arith.constant 0 : index
    %30 = vector.load %arg3[%c3, %c0_21, %c0_22] : memref<9x8x4xf32, #tpu.memory_space<vmem>>, vector<1x8x4xf32>
    %31 = vector.shape_cast %30 : vector<1x8x4xf32> to vector<8x4xf32>
    %c1_i32 = arith.constant 1 : i32
    %32 = tpu.dynamic_rotate %1 by %c1_i32 dim 1 : vector<4x256xf32>, i32 -> vector<4x256xf32>
    %c3_23 = arith.constant 3 : index
    %c0_24 = arith.constant 0 : index
    %c0_25 = arith.constant 0 : index
    %33 = vector.load %arg1[%c3_23, %c0_24, %c0_25] : memref<9x1x256xf32, #tpu.memory_space<vmem>>, vector<1x1x256xf32>
    %34 = vector.shape_cast %33 : vector<1x1x256xf32> to vector<1x256xf32>
    %35 = vector.broadcast %34 : vector<1x256xf32> to vector<4x256xf32>
    %36 = arith.mulf %32, %35 : vector<4x256xf32>
    %cst_26 = arith.constant dense<0.000000e+00> : vector<8x256xf32>
    %37 = tpu.matmul %31, %36, %cst_26 {dimension_numbers = #tpu.dot_dimension_numbers<[1], [0], [0], [1], [0, 0, 1, 1], [], []>} : vector<8x4xf32>, vector<4x256xf32>, vector<8x256xf32> -> vector<8x256xf32>
    %38 = arith.addf %29, %37 : vector<8x256xf32>
    %c4 = arith.constant 4 : index
    %c0_27 = arith.constant 0 : index
    %c0_28 = arith.constant 0 : index
    %39 = vector.load %arg3[%c4, %c0_27, %c0_28] : memref<9x8x4xf32, #tpu.memory_space<vmem>>, vector<1x8x4xf32>
    %40 = vector.shape_cast %39 : vector<1x8x4xf32> to vector<8x4xf32>
    %cst_29 = arith.constant dense<0.000000e+00> : vector<8x256xf32>
    %41 = tpu.matmul %40, %1, %cst_29 {dimension_numbers = #tpu.dot_dimension_numbers<[1], [0], [0], [1], [0, 0, 1, 1], [], []>} : vector<8x4xf32>, vector<4x256xf32>, vector<8x256xf32> -> vector<8x256xf32>
    %42 = arith.addf %38, %41 : vector<8x256xf32>
    %c5 = arith.constant 5 : index
    %c0_30 = arith.constant 0 : index
    %c0_31 = arith.constant 0 : index
    %43 = vector.load %arg3[%c5, %c0_30, %c0_31] : memref<9x8x4xf32, #tpu.memory_space<vmem>>, vector<1x8x4xf32>
    %44 = vector.shape_cast %43 : vector<1x8x4xf32> to vector<8x4xf32>
    %c255_i32 = arith.constant 255 : i32
    %45 = tpu.dynamic_rotate %1 by %c255_i32 dim 1 : vector<4x256xf32>, i32 -> vector<4x256xf32>
    %c5_32 = arith.constant 5 : index
    %c0_33 = arith.constant 0 : index
    %c0_34 = arith.constant 0 : index
    %46 = vector.load %arg1[%c5_32, %c0_33, %c0_34] : memref<9x1x256xf32, #tpu.memory_space<vmem>>, vector<1x1x256xf32>
    %47 = vector.shape_cast %46 : vector<1x1x256xf32> to vector<1x256xf32>
    %48 = vector.broadcast %47 : vector<1x256xf32> to vector<4x256xf32>
    %49 = arith.mulf %45, %48 : vector<4x256xf32>
    %cst_35 = arith.constant dense<0.000000e+00> : vector<8x256xf32>
    %50 = tpu.matmul %44, %49, %cst_35 {dimension_numbers = #tpu.dot_dimension_numbers<[1], [0], [0], [1], [0, 0, 1, 1], [], []>} : vector<8x4xf32>, vector<4x256xf32>, vector<8x256xf32> -> vector<8x256xf32>
    %51 = arith.addf %42, %50 : vector<8x256xf32>
    %c6 = arith.constant 6 : index
    %c0_36 = arith.constant 0 : index
    %c0_37 = arith.constant 0 : index
    %52 = vector.load %arg3[%c6, %c0_36, %c0_37] : memref<9x8x4xf32, #tpu.memory_space<vmem>>, vector<1x8x4xf32>
    %53 = vector.shape_cast %52 : vector<1x8x4xf32> to vector<8x4xf32>
    %c241_i32 = arith.constant 241 : i32
    %54 = tpu.dynamic_rotate %1 by %c241_i32 dim 1 : vector<4x256xf32>, i32 -> vector<4x256xf32>
    %c6_38 = arith.constant 6 : index
    %c0_39 = arith.constant 0 : index
    %c0_40 = arith.constant 0 : index
    %55 = vector.load %arg1[%c6_38, %c0_39, %c0_40] : memref<9x1x256xf32, #tpu.memory_space<vmem>>, vector<1x1x256xf32>
    %56 = vector.shape_cast %55 : vector<1x1x256xf32> to vector<1x256xf32>
    %57 = vector.broadcast %56 : vector<1x256xf32> to vector<4x256xf32>
    %58 = arith.mulf %54, %57 : vector<4x256xf32>
    %cst_41 = arith.constant dense<0.000000e+00> : vector<8x256xf32>
    %59 = tpu.matmul %53, %58, %cst_41 {dimension_numbers = #tpu.dot_dimension_numbers<[1], [0], [0], [1], [0, 0, 1, 1], [], []>} : vector<8x4xf32>, vector<4x256xf32>, vector<8x256xf32> -> vector<8x256xf32>
    %60 = arith.addf %51, %59 : vector<8x256xf32>
    %c7 = arith.constant 7 : index
    %c0_42 = arith.constant 0 : index
    %c0_43 = arith.constant 0 : index
    %61 = vector.load %arg3[%c7, %c0_42, %c0_43] : memref<9x8x4xf32, #tpu.memory_space<vmem>>, vector<1x8x4xf32>
    %62 = vector.shape_cast %61 : vector<1x8x4xf32> to vector<8x4xf32>
    %c240_i32 = arith.constant 240 : i32
    %63 = tpu.dynamic_rotate %1 by %c240_i32 dim 1 : vector<4x256xf32>, i32 -> vector<4x256xf32>
    %c7_44 = arith.constant 7 : index
    %c0_45 = arith.constant 0 : index
    %c0_46 = arith.constant 0 : index
    %64 = vector.load %arg1[%c7_44, %c0_45, %c0_46] : memref<9x1x256xf32, #tpu.memory_space<vmem>>, vector<1x1x256xf32>
    %65 = vector.shape_cast %64 : vector<1x1x256xf32> to vector<1x256xf32>
    %66 = vector.broadcast %65 : vector<1x256xf32> to vector<4x256xf32>
    %67 = arith.mulf %63, %66 : vector<4x256xf32>
    %cst_47 = arith.constant dense<0.000000e+00> : vector<8x256xf32>
    %68 = tpu.matmul %62, %67, %cst_47 {dimension_numbers = #tpu.dot_dimension_numbers<[1], [0], [0], [1], [0, 0, 1, 1], [], []>} : vector<8x4xf32>, vector<4x256xf32>, vector<8x256xf32> -> vector<8x256xf32>
    %69 = arith.addf %60, %68 : vector<8x256xf32>
    %c8 = arith.constant 8 : index
    %c0_48 = arith.constant 0 : index
    %c0_49 = arith.constant 0 : index
    %70 = vector.load %arg3[%c8, %c0_48, %c0_49] : memref<9x8x4xf32, #tpu.memory_space<vmem>>, vector<1x8x4xf32>
    %71 = vector.shape_cast %70 : vector<1x8x4xf32> to vector<8x4xf32>
    %c239_i32 = arith.constant 239 : i32
    %72 = tpu.dynamic_rotate %1 by %c239_i32 dim 1 : vector<4x256xf32>, i32 -> vector<4x256xf32>
    %c8_50 = arith.constant 8 : index
    %c0_51 = arith.constant 0 : index
    %c0_52 = arith.constant 0 : index
    %73 = vector.load %arg1[%c8_50, %c0_51, %c0_52] : memref<9x1x256xf32, #tpu.memory_space<vmem>>, vector<1x1x256xf32>
    %74 = vector.shape_cast %73 : vector<1x1x256xf32> to vector<1x256xf32>
    %75 = vector.broadcast %74 : vector<1x256xf32> to vector<4x256xf32>
    %76 = arith.mulf %72, %75 : vector<4x256xf32>
    %cst_53 = arith.constant dense<0.000000e+00> : vector<8x256xf32>
    %77 = tpu.matmul %71, %76, %cst_53 {dimension_numbers = #tpu.dot_dimension_numbers<[1], [0], [0], [1], [0, 0, 1, 1], [], []>} : vector<8x4xf32>, vector<4x256xf32>, vector<8x256xf32> -> vector<8x256xf32>
    %78 = arith.addf %69, %77 : vector<8x256xf32>
    %cst_54 = arith.constant dense<0.000000e+00> : vector<8xf32>
    %79 = vector.multi_reduction <add>, %78, %cst_54 [1] : vector<8x256xf32> to vector<8xf32>
    %80 = vector.shape_cast %79 : vector<8xf32> to vector<8x1xf32>
    %cst_55 = arith.constant 2.560000e+02 : f32
    %81 = vector.broadcast %cst_55 : f32 to vector<8x1xf32>
    %82 = arith.divf %80, %81 : vector<8x1xf32>
    %83 = vector.broadcast %82 : vector<8x1xf32> to vector<8x256xf32>
    %84 = arith.subf %78, %83 : vector<8x256xf32>
    %85 = arith.mulf %84, %84 : vector<8x256xf32>
    %cst_56 = arith.constant dense<0.000000e+00> : vector<8xf32>
    %86 = vector.multi_reduction <add>, %85, %cst_56 [1] : vector<8x256xf32> to vector<8xf32>
    %87 = vector.shape_cast %86 : vector<8xf32> to vector<8x1xf32>
    %cst_57 = arith.constant 2.560000e+02 : f32
    %88 = vector.broadcast %cst_57 : f32 to vector<8x1xf32>
    %89 = arith.divf %87, %88 : vector<8x1xf32>
    %cst_58 = arith.constant 9.99999974E-6 : f32
    %90 = vector.broadcast %cst_58 : f32 to vector<8x1xf32>
    %91 = arith.addf %89, %90 : vector<8x1xf32>
    %92 = math.rsqrt %91 : vector<8x1xf32>
    %93 = vector.broadcast %92 : vector<8x1xf32> to vector<8x256xf32>
    %94 = arith.mulf %84, %93 : vector<8x256xf32>
    %cst_59 = arith.constant 0.000000e+00 : f32
    %95 = vector.broadcast %cst_59 : f32 to vector<8x256xf32>
    %96 = arith.cmpf ogt, %94, %95 : vector<8x256xf32>
    %cst_60 = arith.constant 5.000000e-02 : f32
    %97 = vector.broadcast %cst_60 : f32 to vector<8x256xf32>
    %98 = arith.mulf %97, %94 : vector<8x256xf32>
    %99 = arith.select %96, %94, %98 : vector<8x256xi1>, vector<8x256xf32>
    %c0_61 = arith.constant 0 : index
    %c0_62 = arith.constant 0 : index
    %c0_63 = arith.constant 0 : index
    %100 = vector.load %arg4[%c0_61, %c0_62, %c0_63] : memref<1x8x256xf32, #tpu.memory_space<vmem>>, vector<1x8x256xf32>
    %101 = vector.shape_cast %100 : vector<1x8x256xf32> to vector<8x256xf32>
    %102 = vector.shape_cast %99 : vector<8x256xf32> to vector<1x8x256xf32>
    tpu.vector_store %arg4[%c0_61, %c0_62, %c0_63], %102 {strides = array<i32>} : memref<1x8x256xf32, #tpu.memory_space<vmem>>, vector<1x8x256xf32>,
    return
  }
  func.func @transform_0(%arg0: i32) -> (i32, i32, i32) {
    %c0_i32 = arith.constant 0 : i32
    %c0_i32_0 = arith.constant 0 : i32
    %c0_i32_1 = arith.constant 0 : i32
    %c0_i32_2 = arith.constant 0 : i32
    return %c0_i32, %c0_i32_0, %c0_i32_1 : i32, i32, i32
  }
  func.func @transform_1(%arg0: i32) -> (i32, i32, i32) {
    %c0_i32 = arith.constant 0 : i32
    %c0_i32_0 = arith.constant 0 : i32
    %c0_i32_1 = arith.constant 0 : i32
    return %arg0, %c0_i32, %c0_i32_0 : i32, i32, i32
  }
  func.func @transform_2(%arg0: i32) -> (i32, i32, i32) {
    %c0_i32 = arith.constant 0 : i32
    %c0_i32_0 = arith.constant 0 : i32
    %c0_i32_1 = arith.constant 0 : i32
    %c0_i32_2 = arith.constant 0 : i32
    return %c0_i32, %c0_i32_0, %c0_i32_1 : i32, i32, i32
  }
  func.func @transform_3(%arg0: i32) -> (i32, i32, i32) {
    %c0_i32 = arith.constant 0 : i32
    %c0_i32_0 = arith.constant 0 : i32
    %c0_i32_1 = arith.constant 0 : i32
    return %arg0, %c0_i32, %c0_i32_0 : i32, i32, i32
  }
}

</mosaic_0001>

<llo_original>
// kernel: conv_bn_relu_pallas.1
$region0: #{conv_bn_relu_pallas.1}
  #allocation0 [shape = 'u32[]', space=smem, size = 0x4, offset = 0x4, fixed_abs, tag = 'smem constant byte address 0x4 - core index']
  #allocation1 [shape = 'u32[144,128]{1,0:T(1,128)}', space=vmem, size = 0x12000, scoped, tag = 'internal scratch']
  %s0 = inlined_call_operand.vmem [shape: f32[9,1,256], index: 0, kind: input, shape index: {}]
  %s1 = inlined_call_operand.vmem [shape: f32[2,4,256], index: 1, kind: input, shape index: {}]
  %s2 = inlined_call_operand.vmem [shape: f32[9,8,4], index: 2, kind: input, shape index: {}]
  %s3 = inlined_call_operand.vmem [shape: f32[2,8,256], index: 3, kind: output, shape index: {}]
  %s4 = sld [smem:[#allocation0]]
  $region45: #{conv_bn_relu_pallas.1} parent=0
    _
  %s6 = ssub.s32 1, %s4
  %s7 = scalar_select 0, %s6, %s4
  loop: start=0, step=1, limit=4
  $region2: #{conv_bn_relu_pallas.1} parent=0 // loop_pre_header
    _
  $region3: #{conv_bn_relu_pallas.1} parent=0 // loop_header
    %s9 = sphi 0, %s13
    %p10 = scmp.ge.s32.totalorder %s9, 4
    %s17 = sphi 0, %s17
    %s19 = sphi 0, %s17
    %s20 = sphi 0, %s19
    %s34 = sphi 0, %s20
    %s40 = sphi 0, %s42
    %s43 = sphi 0, %s40
    %s44 = sphi 0, %s43
    %s60 = sphi 0, %s44
    %s64 = sphi 0, %s64
    %s66 = sphi 0, %s64
    %s67 = sphi 0, %s66
    %s81 = sphi 0, %s67
    %s87 = sphi 0, %s89
    %s90 = sphi 0, %s87
    %s91 = sphi 0, %s90
    %s107 = sphi 0, %s91
  $region4: #{conv_bn_relu_pallas.1} parent=0 // loop_header_branch
    %12 = sbr.rel (%p10) target = $region8
  $region5: #{conv_bn_relu_pallas.1} parent=0 // loop_body
    %s14 = ssub.s32 %s9, 1
    %s15 = ssub.s32 %s9, 2
    %s16 = sadd.s32 %s9, 1
    %s18 = sadd.s32 %s17, 1
    %p21 = scmp.eq.s32.totalorder %s9, 1
    %p22 = scmp.ne.s32.totalorder %s17, %s19
    %p23 = scmp.eq.s32.totalorder %s9, 0
    %p24 = por %p22, %p23
    %p25 = scmp.ne.s32.totalorder %s17, %s19
    %p26 = scmp.eq.s32.totalorder %s14, 1
    %p27 = por %p25, %p26
    %p28 = scmp.ne.s32.totalorder %s19, %s20
    %p29 = scmp.eq.s32.totalorder %s14, 0
    %p30 = por %p28, %p29
    %p31 = scmp.ne.s32.totalorder %s19, %s20
    %p32 = scmp.eq.s32.totalorder %s15, 1
    %p33 = por %p31, %p32
    %p35 = scmp.ne.s32.totalorder %s20, %s34
    %p36 = scmp.eq.s32.totalorder %s15, 0
    %p37 = por %p35, %p36
    %s38 = ssub.s32 %s9, %s16
    %p39 = scmp.eq.s32.totalorder %s38, 0
    %s41 = sadd.s32 %s40, 1
    %s42 = scalar_select %p39, %s40, %s41
    %p45 = pneg %p39
    %p46 = scmp.eq.s32.totalorder %s9, 1
    %p47 = por %p45, %p46
    %p48 = scmp.ne.s32.totalorder %s40, %s43
    %p49 = scmp.eq.s32.totalorder %s9, 0
    %p50 = por %p48, %p49
    %p51 = scmp.ne.s32.totalorder %s40, %s43
    %p52 = scmp.eq.s32.totalorder %s14, 1
    %p53 = por %p51, %p52
    %p54 = scmp.ne.s32.totalorder %s43, %s44
    %p55 = scmp.eq.s32.totalorder %s14, 0
    %p56 = por %p54, %p55
    %p57 = scmp.ne.s32.totalorder %s43, %s44
    %p58 = scmp.eq.s32.totalorder %s15, 1
    %p59 = por %p57, %p58
    %p61 = scmp.ne.s32.totalorder %s44, %s60
    %p62 = scmp.eq.s32.totalorder %s15, 0
    %p63 = por %p61, %p62
    %s65 = sadd.s32 %s64, 1
    %p68 = scmp.eq.s32.totalorder %s9, 1
    %p69 = scmp.ne.s32.totalorder %s64, %s66
    %p70 = scmp.eq.s32.totalorder %s9, 0
    %p71 = por %p69, %p70
    %p72 = scmp.ne.s32.totalorder %s64, %s66
    %p73 = scmp.eq.s32.totalorder %s14, 1
    %p74 = por %p72, %p73
    %p75 = scmp.ne.s32.totalorder %s66, %s67
    %p76 = scmp.eq.s32.totalorder %s14, 0
    %p77 = por %p75, %p76
    %p78 = scmp.ne.s32.totalorder %s66, %s67
    %p79 = scmp.eq.s32.totalorder %s15, 1
    %p80 = por %p78, %p79
    %p82 = scmp.ne.s32.totalorder %s67, %s81
    %p83 = scmp.eq.s32.totalorder %s15, 0
    %p84 = por %p82, %p83
    %s85 = ssub.s32 %s9, %s16
    %p86 = scmp.eq.s32.totalorder %s85, 0
    %s88 = sadd.s32 %s87, 1
    %s89 = scalar_select %p86, %s87, %s88
    %p92 = pneg %p86
    %p93 = scmp.eq.s32.totalorder %s9, 1
    %p94 = por %p92, %p93
    %p95 = scmp.ne.s32.totalorder %s87, %s90
    %p96 = scmp.eq.s32.totalorder %s9, 0
    %p97 = por %p95, %p96
    %p98 = scmp.ne.s32.totalorder %s87, %s90
    %p99 = scmp.eq.s32.totalorder %s14, 1
    %p100 = por %p98, %p99
    %p101 = scmp.ne.s32.totalorder %s90, %s91
    %p102 = scmp.eq.s32.totalorder %s14, 0
    %p103 = por %p101, %p102
    %p104 = scmp.ne.s32.totalorder %s90, %s91
    %p105 = scmp.eq.s32.totalorder %s15, 1
    %p106 = por %p104, %p105
    %p108 = scmp.ne.s32.totalorder %s91, %s107
    %p109 = scmp.eq.s32.totalorder %s15, 0
    %p110 = por %p108, %p109
    %p111 = scmp.le.s32.totalorder 1, %s9
    %p112 = scmp.lt.s32.totalorder %s9, 3
    %p113 = pnand %p111, %p112
    %p114 = pneg %p113
    // Predicated region
    $region9: #{conv_bn_relu_pallas.1} parent=5 // pred_check
      _
    $region10: #{conv_bn_relu_pallas.1} parent=5 // pred_check_branch
      %116 = sbr.rel (%p113) target = $region12
    $region11: #{conv_bn_relu_pallas.1} parent=5 // pred_region
      %s117 = ssub.s32 %s9, 1
      // Predicated region
      $region13: #{conv_bn_relu_pallas.1} parent=11 // pred_check
        %p118 = pneg %p30
      $region14: #{conv_bn_relu_pallas.1} parent=11 // pred_check_branch
        %120 = sbr.rel (%p118) target = $region16
      $region15: #{conv_bn_relu_pallas.1} parent=11 // pred_region
        _
      $region16: #{conv_bn_relu_pallas.1} parent=11 // pred_fallthru
        _
      // Predicated region
      $region17: #{conv_bn_relu_pallas.1} parent=11 // pred_check
        %p121 = pneg %p77
      $region18: #{conv_bn_relu_pallas.1} parent=11 // pred_check_branch
        %123 = sbr.rel (%p121) target = $region20
      $region19: #{conv_bn_relu_pallas.1} parent=11 // pred_region
        _
      $region20: #{conv_bn_relu_pallas.1} parent=11 // pred_fallthru
        _
    $region12: #{conv_bn_relu_pallas.1} parent=5 // pred_fallthru
      _
    %p124 = scmp.lt.s32.totalorder %s9, 2
    // Predicated region
    $region21: #{conv_bn_relu_pallas.1} parent=5 // pred_check
      %p125 = pneg %p124
    $region22: #{conv_bn_relu_pallas.1} parent=5 // pred_check_branch
      %127 = sbr.rel (%p125) target = $region24
    $region23: #{conv_bn_relu_pallas.1} parent=5 // pred_region
      // Predicated region
      $region25: #{conv_bn_relu_pallas.1} parent=23 // pred_check
        %p128 = pneg %p50
      $region26: #{conv_bn_relu_pallas.1} parent=23 // pred_check_branch
        %130 = sbr.rel (%p128) target = $region28
      $region27: #{conv_bn_relu_pallas.1} parent=23 // pred_region
        %p131 = scmp.lt.s32.totalorder %s9, 1
        %s132 = scalar_select %p131, %s9, 1
        %s133 = smul.addr %s132, 2
        %s134 = smul.addr %s133, 4
        %s135 = scalar_lea.vmem %s1, %s134
      $region28: #{conv_bn_relu_pallas.1} parent=23 // pred_fallthru
        _
    $region24: #{conv_bn_relu_pallas.1} parent=5 // pred_fallthru
      _
    %p136 = scmp.le.s32.totalorder 1, %s9
    %p137 = scmp.lt.s32.totalorder %s9, 3
    %p138 = pnand %p136, %p137
    %p139 = pneg %p138
    // Predicated region
    $region29: #{conv_bn_relu_pallas.1} parent=5 // pred_check
      _
    $region30: #{conv_bn_relu_pallas.1} parent=5 // pred_check_branch
      %141 = sbr.rel (%p138) target = $region32
    $region31: #{conv_bn_relu_pallas.1} parent=5 // pred_region
      %s142 = ssub.s32 %s9, 1
      %p143 = pneg %p30
      %p144 = pneg %p27
      %p145 = scmp.lt.s32.totalorder %s14, 1
      %s146 = scalar_select %p145, %s14, 1
      %s147 = smul.addr %s146, 2
      %s148 = smul.addr %s147, 4
      %s149 = scalar_lea.vmem %s1, %s148
      %p150 = pneg %p56
      %p151 = pneg %p53
      %p152 = pneg %p77
      %p153 = pneg %p74
      %p154 = pneg %p103
      %p155 = pneg %p100
      %p156 = scmp.lt.s32.totalorder %s14, 1
      %s157 = scalar_select %p156, %s14, 1
      %s158 = smul.addr %s157, 2
      %s159 = smul.addr %s158, 8
      %s160 = scalar_lea.vmem %s3, %s159
      %p161 = scmp.lt.s32.totalorder %s14, 1
      %s162 = scalar_select %p161, %s14, 1
      %s163 = smul.addr %s162, 2
      %s164 = smul.addr %s163, 4
      %s165 = scalar_lea.vmem %s1, %s164
      %p166 = scmp.lt.s32.totalorder %s14, 1
      %s167 = scalar_select %p166, %s14, 1
      %s168 = smul.addr %s167, 2
      %s169 = smul.addr %s168, 8
      %s170 = scalar_lea.vmem %s3, %s169
      %v171 = vld [vmem:[%s165] sm:$0xff]
      %v172 = vld [vmem:[%s2] sm:$0xff]
      %v174 = vcombine.high %v171, %v171
      %176 = vrot.lane.b32.xlu0 %v171, 17
      %v177 = vpop.permute.xlu0 %176
      %178 = vrot.lane.b32.xlu0 %v174, 17
      %v179 = vpop.permute.xlu0 %178
      %v180 = vlaneseq
      %v181 = vand.u32 %v180, 127
      %vm182 = vcmp.lt.s32.totalorder %v181, 17
      %v183 = vsel %vm182, %v177, %v179
      %v184 = vsel %vm182, %v179, %v177
      %v185 = vld [vmem:[%s0] sm:$0x3]
      %v187 = vlaneseq
      %v188 = vshrl.u32 %v187, 7
      %v189 = vsub.s32 0, %v188
      %v190 = vrot.slane %v185, %v189
      %v191 = vlaneseq
      %v192 = vshrl.u32 %v191, 7
      %v193 = vsub.s32 1, %v192
      %v194 = vrot.slane %v185, %v193
      %v197 = vmul.f32 %v184, %v190
      %v198 = vmul.f32 %v183, %v194
      %s199 = scalar_lea.vmem %s2, 8
      %v200 = vld [vmem:[%s199] sm:$0xff]
      %201 = vrot.lane.b32.xlu0 %v171, 16
      %v202 = vpop.permute.xlu0 %201
      %203 = vrot.lane.b32.xlu0 %v174, 16
      %v204 = vpop.permute.xlu0 %203
      %vm205 = vcmp.lt.s32.totalorder %v181, 16
      %v206 = vsel %vm205, %v202, %v204
      %v207 = vsel %vm205, %v204, %v202
      %s208 = scalar_lea.vmem %s0, 2
      %v209 = vld [vmem:[%s208] sm:$0x3]
      %v211 = vlaneseq
      %v212 = vshrl.u32 %v211, 7
      %v213 = vsub.s32 0, %v212
      %v214 = vrot.slane %v209, %v213
      %v215 = vlaneseq
      %v216 = vshrl.u32 %v215, 7
      %v217 = vsub.s32 1, %v216
      %v218 = vrot.slane %v209, %v217
      %v221 = vmul.f32 %v207, %v214
      %v222 = vmul.f32 %v206, %v218
      %vm223 = vcmask 31744
      %v225 = vsel %vm223, %v200, 0
      %vm227 = vcmask 1043456
      %v229 = vsel %vm227, %v221, 0
      %v232 = vsel %vm227, %v222, 0
      %234 = vmatprep.subr.mxu0 %v232
      %235 = vmatpush1.msra.mxu0 %v229
      %236 = vmatprep.subr.mxu0 0.0
      %237 = vmatpush1.msra.mxu0 0.0
      %238 = vmatprep.subr.mxu0 0.0
      %239 = vmatpush1.msra.mxu0 0.0
      %240 = vmatprep.subr.mxu0 0.0
      %241 = vmatpush1.msra.mxu0 0.0
      %242 = vmatprep.subr.mxu0 0.0
      %243 = vmatpush1.msra.mxu0 0.0
      %244 = vmatprep.subr.mxu0 0.0
      %245 = vmatpush1.msra.mxu0 0.0
      %246 = vmatprep.subr.mxu0 0.0
      %247 = vmatpush1.msra.mxu0 0.0
      %248 = vmatprep.subr.mxu0 0.0
      %249 = vmatpush1.msra.mxu0 0.0
      %250 = vmatprep.subr.mxu0 0.0
      %251 = vmatpush1.msra.mxu0 0.0
      %252 = vmatprep.subr.mxu0 0.0
      %253 = vmatpush1.msra.mxu0 0.0
      %254 = vmatprep.subr.mxu0 0.0
      %255 = vmatpush1.msra.mxu0 0.0
      %256 = vmatprep.subr.mxu0 0.0
      %257 = vmatpush1.msra.mxu0 0.0
      %258 = vmatprep.subr.mxu0 0.0
      %259 = vmatpush1.msra.mxu0 0.0
      %260 = vmatprep.subr.mxu0 0.0
      %261 = vmatpush1.msra.mxu0 0.0
      %262 = vmatprep.subr.mxu0 0.0
      %263 = vmatpush1.msra.mxu0 0.0
      %264 = vmatprep.subr.mxu0 0.0
      %265 = vmatpush1.msra.mxu0 0.0
      %266 = vmatprep.subr.mxu0 0.0
      %267 = vmatpush1.msra.mxu0 0.0
      %268 = vmatprep.subr.mxu0 0.0
      %269 = vmatpush1.msra.mxu0 0.0
      %270 = vmatprep.subr.mxu0 0.0
      %271 = vmatpush1.msra.mxu0 0.0
      %272 = vmatprep.subr.mxu0 0.0
      %273 = vmatpush1.msra.mxu0 0.0
      %274 = vmatprep.subr.mxu0 0.0
      %275 = vmatpush1.msra.mxu0 0.0
      %276 = vmatprep.subr.mxu0 0.0
      %277 = vmatpush1.msra.mxu0 0.0
      %278 = vmatprep.subr.mxu0 0.0
      %279 = vmatpush1.msra.mxu0 0.0
      %280 = vmatprep.subr.mxu0 0.0
      %281 = vmatpush1.msra.mxu0 0.0
      %282 = vmatprep.subr.mxu0 0.0
      %283 = vmatpush1.msra.mxu0 0.0
      %284 = vmatprep.subr.mxu0 0.0
      %285 = vmatpush1.msra.mxu0 0.0
      %286 = vmatprep.subr.mxu0 0.0
      %287 = vmatpush1.msra.mxu0 0.0
      %288 = vmatprep.subr.mxu0 0.0
      %289 = vmatpush1.msra.mxu0 0.0
      %290 = vmatprep.subr.mxu0 0.0
      %291 = vmatpush1.msra.mxu0 0.0
      %292 = vmatprep.subr.mxu0 0.0
      %293 = vmatpush1.msra.mxu0 0.0
      %294 = vmatprep.subr.mxu0 0.0
      %295 = vmatpush1.msra.mxu0 0.0
      %296 = vmatprep.subr.mxu0 0.0
      %297 = vmatpush1.msra.mxu0 0.0
      %298 = vmatprep.mubr.f32.mxu0 0.0
      %299 = vmatmul.mubr.f32.gmra.mrb[0].mxu0 %v225
      %v300 = vpop.f32.mrb[0].mxu0
      %v301 = vadd.f32 0.0, %v300
      %v302 = vpop.f32.mrb[0].mxu0
      %v303 = vadd.f32 0.0, %v302
      %304 = vdwg.mxu0
      %v306 = vsel %vm223, %v172, 0
      %v309 = vsel %vm227, %v197, 0
      %v312 = vsel %vm227, %v198, 0
      %314 = vmatprep.subr.mxu0 %v312
      %315 = vmatpush1.msra.mxu0 %v309
      %316 = vmatprep.subr.mxu0 0.0
      %317 = vmatpush1.msra.mxu0 0.0
      %318 = vmatprep.subr.mxu0 0.0
      %319 = vmatpush1.msra.mxu0 0.0
      %320 = vmatprep.subr.mxu0 0.0
      %321 = vmatpush1.msra.mxu0 0.0
      %322 = vmatprep.subr.mxu0 0.0
      %323 = vmatpush1.msra.mxu0 0.0
      %324 = vmatprep.subr.mxu0 0.0
      %325 = vmatpush1.msra.mxu0 0.0
      %326 = vmatprep.subr.mxu0 0.0
      %327 = vmatpush1.msra.mxu0 0.0
      %328 = vmatprep.subr.mxu0 0.0
      %329 = vmatpush1.msra.mxu0 0.0
      %330 = vmatprep.subr.mxu0 0.0
      %331 = vmatpush1.msra.mxu0 0.0
      %332 = vmatprep.subr.mxu0 0.0
      %333 = vmatpush1.msra.mxu0 0.0
      %334 = vmatprep.subr.mxu0 0.0
      %335 = vmatpush1.msra.mxu0 0.0
      %336 = vmatprep.subr.mxu0 0.0
      %337 = vmatpush1.msra.mxu0 0.0
      %338 = vmatprep.subr.mxu0 0.0
      %339 = vmatpush1.msra.mxu0 0.0
      %340 = vmatprep.subr.mxu0 0.0
      %341 = vmatpush1.msra.mxu0 0.0
      %342 = vmatprep.subr.mxu0 0.0
      %343 = vmatpush1.msra.mxu0 0.0
      %344 = vmatprep.subr.mxu0 0.0
      %345 = vmatpush1.msra.mxu0 0.0
      %346 = vmatprep.subr.mxu0 0.0
      %347 = vmatpush1.msra.mxu0 0.0
      %348 = vmatprep.subr.mxu0 0.0
      %349 = vmatpush1.msra.mxu0 0.0
      %350 = vmatprep.subr.mxu0 0.0
      %351 = vmatpush1.msra.mxu0 0.0
      %352 = vmatprep.subr.mxu0 0.0
      %353 = vmatpush1.msra.mxu0 0.0
      %354 = vmatprep.subr.mxu0 0.0
      %355 = vmatpush1.msra.mxu0 0.0
      %356 = vmatprep.subr.mxu0 0.0
      %357 = vmatpush1.msra.mxu0 0.0
      %358 = vmatprep.subr.mxu0 0.0
      %359 = vmatpush1.msra.mxu0 0.0
      %360 = vmatprep.subr.mxu0 0.0
      %361 = vmatpush1.msra.mxu0 0.0
      %362 = vmatprep.subr.mxu0 0.0
      %363 = vmatpush1.msra.mxu0 0.0
      %364 = vmatprep.subr.mxu0 0.0
      %365 = vmatpush1.msra.mxu0 0.0
      %366 = vmatprep.subr.mxu0 0.0
      %367 = vmatpush1.msra.mxu0 0.0
      %368 = vmatprep.subr.mxu0 0.0
      %369 = vmatpush1.msra.mxu0 0.0
      %370 = vmatprep.subr.mxu0 0.0
      %371 = vmatpush1.msra.mxu0 0.0
      %372 = vmatprep.subr.mxu0 0.0
      %373 = vmatpush1.msra.mxu0 0.0
      %374 = vmatprep.subr.mxu0 0.0
      %375 = vmatpush1.msra.mxu0 0.0
      %376 = vmatprep.subr.mxu0 0.0
      %377 = vmatpush1.msra.mxu0 0.0
      %378 = vmatprep.mubr.f32.mxu0 0.0
      %379 = vmatmul.mubr.f32.gmra.mrb[0].mxu0 %v306
      %v380 = vpop.f32.mrb[0].mxu0
      %v381 = vadd.f32 %v301, %v380
      %v382 = vpop.f32.mrb[0].mxu0
      %v383 = vadd.f32 %v303, %v382
      %384 = vdwg.mxu0
      %s385 = scalar_lea.vmem %s2, 16
      %v386 = vld [vmem:[%s385] sm:$0xff]
      %387 = vrot.lane.b32.xlu0 %v171, 15
      %v388 = vpop.permute.xlu0 %387
      %389 = vrot.lane.b32.xlu0 %v174, 15
      %v390 = vpop.permute.xlu0 %389
      %vm391 = vcmp.lt.s32.totalorder %v181, 15
      %v392 = vsel %vm391, %v388, %v390
      %v393 = vsel %vm391, %v390, %v388
      %s394 = scalar_lea.vmem %s0, 4
      %v395 = vld [vmem:[%s394] sm:$0x3]
      %v397 = vlaneseq
      %v398 = vshrl.u32 %v397, 7
      %v399 = vsub.s32 0, %v398
      %v400 = vrot.slane %v395, %v399
      %v401 = vlaneseq
      %v402 = vshrl.u32 %v401, 7
      %v403 = vsub.s32 1, %v402
      %v404 = vrot.slane %v395, %v403
      %v407 = vmul.f32 %v393, %v400
      %v408 = vmul.f32 %v392, %v404
      %v410 = vsel %vm223, %v386, 0
      %v413 = vsel %vm227, %v407, 0
      %v416 = vsel %vm227, %v408, 0
      %418 = vmatprep.subr.mxu0 %v416
      %419 = vmatpush1.msra.mxu0 %v413
      %420 = vmatprep.subr.mxu0 0.0
      %421 = vmatpush1.msra.mxu0 0.0
      %422 = vmatprep.subr.mxu0 0.0
      %423 = vmatpush1.msra.mxu0 0.0
      %424 = vmatprep.subr.mxu0 0.0
      %425 = vmatpush1.msra.mxu0 0.0
      %426 = vmatprep.subr.mxu0 0.0
      %427 = vmatpush1.msra.mxu0 0.0
      %428 = vmatprep.subr.mxu0 0.0
      %429 = vmatpush1.msra.mxu0 0.0
      %430 = vmatprep.subr.mxu0 0.0
      %431 = vmatpush1.msra.mxu0 0.0
      %432 = vmatprep.subr.mxu0 0.0
      %433 = vmatpush1.msra.mxu0 0.0
      %434 = vmatprep.subr.mxu0 0.0
      %435 = vmatpush1.msra.mxu0 0.0
      %436 = vmatprep.subr.mxu0 0.0
      %437 = vmatpush1.msra.mxu0 0.0
      %438 = vmatprep.subr.mxu0 0.0
      %439 = vmatpush1.msra.mxu0 0.0
      %440 = vmatprep.subr.mxu0 0.0
      %441 = vmatpush1.msra.mxu0 0.0
      %442 = vmatprep.subr.mxu0 0.0
      %443 = vmatpush1.msra.mxu0 0.0
      %444 = vmatprep.subr.mxu0 0.0
      %445 = vmatpush1.msra.mxu0 0.0
      %446 = vmatprep.subr.mxu0 0.0
      %447 = vmatpush1.msra.mxu0 0.0
      %448 = vmatprep.subr.mxu0 0.0
      %449 = vmatpush1.msra.mxu0 0.0
      %450 = vmatprep.subr.mxu0 0.0
      %451 = vmatpush1.msra.mxu0 0.0
      %452 = vmatprep.subr.mxu0 0.0
      %453 = vmatpush1.msra.mxu0 0.0
      %454 = vmatprep.subr.mxu0 0.0
      %455 = vmatpush1.msra.mxu0 0.0
      %456 = vmatprep.subr.mxu0 0.0
      %457 = vmatpush1.msra.mxu0 0.0
      %458 = vmatprep.subr.mxu0 0.0
      %459 = vmatpush1.msra.mxu0 0.0
      %460 = vmatprep.subr.mxu0 0.0
      %461 = vmatpush1.msra.mxu0 0.0
      %462 = vmatprep.subr.mxu0 0.0
      %463 = vmatpush1.msra.mxu0 0.0
      %464 = vmatprep.subr.mxu0 0.0
      %465 = vmatpush1.msra.mxu0 0.0
      %466 = vmatprep.subr.mxu0 0.0
      %467 = vmatpush1.msra.mxu0 0.0
      %468 = vmatprep.subr.mxu0 0.0
      %469 = vmatpush1.msra.mxu0 0.0
      %470 = vmatprep.subr.mxu0 0.0
      %471 = vmatpush1.msra.mxu0 0.0
      %472 = vmatprep.subr.mxu0 0.0
      %473 = vmatpush1.msra.mxu0 0.0
      %474 = vmatprep.subr.mxu0 0.0
      %475 = vmatpush1.msra.mxu0 0.0
      %476 = vmatprep.subr.mxu0 0.0
      %477 = vmatpush1.msra.mxu0 0.0
      %478 = vmatprep.subr.mxu0 0.0
      %479 = vmatpush1.msra.mxu0 0.0
      %480 = vmatprep.subr.mxu0 0.0
      %481 = vmatpush1.msra.mxu0 0.0
      %482 = vmatprep.mubr.f32.mxu0 0.0
      %483 = vmatmul.mubr.f32.gmra.mrb[0].mxu0 %v410
      %v484 = vpop.f32.mrb[0].mxu0
      %v485 = vadd.f32 0.0, %v484
      %v486 = vpop.f32.mrb[0].mxu0
      %v487 = vadd.f32 0.0, %v486
      %488 = vdwg.mxu0
      %v489 = vadd.f32 %v381, %v485
      %v490 = vadd.f32 %v383, %v487
      %s491 = scalar_lea.vmem %s2, 24
      %v492 = vld [vmem:[%s491] sm:$0xff]
      %493 = vrot.lane.b32.xlu0 %v171, 1
      %v494 = vpop.permute.xlu0 %493
      %495 = vrot.lane.b32.xlu0 %v174, 1
      %v496 = vpop.permute.xlu0 %495
      %vm497 = vcmp.lt.s32.totalorder %v181, 1
      %v498 = vsel %vm497, %v494, %v496
      %v499 = vsel %vm497, %v496, %v494
      %s500 = scalar_lea.vmem %s0, 6
      %v501 = vld [vmem:[%s500] sm:$0x3]
      %v503 = vlaneseq
      %v504 = vshrl.u32 %v503, 7
      %v505 = vsub.s32 0, %v504
      %v506 = vrot.slane %v501, %v505
      %v507 = vlaneseq
      %v508 = vshrl.u32 %v507, 7
      %v509 = vsub.s32 1, %v508
      %v510 = vrot.slane %v501, %v509
      %v513 = vmul.f32 %v499, %v506
      %v514 = vmul.f32 %v498, %v510
      %v516 = vsel %vm223, %v492, 0
      %v519 = vsel %vm227, %v513, 0
      %v522 = vsel %vm227, %v514, 0
      %524 = vmatprep.subr.mxu0 %v522
      %525 = vmatpush1.msra.mxu0 %v519
      %526 = vmatprep.subr.mxu0 0.0
      %527 = vmatpush1.msra.mxu0 0.0
      %528 = vmatprep.subr.mxu0 0.0
      %529 = vmatpush1.msra.mxu0 0.0
      %530 = vmatprep.subr.mxu0 0.0
      %531 = vmatpush1.msra.mxu0 0.0
      %532 = vmatprep.subr.mxu0 0.0
      %533 = vmatpush1.msra.mxu0 0.0
      %534 = vmatprep.subr.mxu0 0.0
      %535 = vmatpush1.msra.mxu0 0.0
      %536 = vmatprep.subr.mxu0 0.0
      %537 = vmatpush1.msra.mxu0 0.0
      %538 = vmatprep.subr.mxu0 0.0
      %539 = vmatpush1.msra.mxu0 0.0
      %540 = vmatprep.subr.mxu0 0.0
      %541 = vmatpush1.msra.mxu0 0.0
      %542 = vmatprep.subr.mxu0 0.0
      %543 = vmatpush1.msra.mxu0 0.0
      %544 = vmatprep.subr.mxu0 0.0
      %545 = vmatpush1.msra.mxu0 0.0
      %546 = vmatprep.subr.mxu0 0.0
      %547 = vmatpush1.msra.mxu0 0.0
      %548 = vmatprep.subr.mxu0 0.0
      %549 = vmatpush1.msra.mxu0 0.0
      %550 = vmatprep.subr.mxu0 0.0
      %551 = vmatpush1.msra.mxu0 0.0
      %552 = vmatprep.subr.mxu0 0.0
      %553 = vmatpush1.msra.mxu0 0.0
      %554 = vmatprep.subr.mxu0 0.0
      %555 = vmatpush1.msra.mxu0 0.0
      %556 = vmatprep.subr.mxu0 0.0
      %557 = vmatpush1.msra.mxu0 0.0
      %558 = vmatprep.subr.mxu0 0.0
      %559 = vmatpush1.msra.mxu0 0.0
      %560 = vmatprep.subr.mxu0 0.0
      %561 = vmatpush1.msra.mxu0 0.0
      %562 = vmatprep.subr.mxu0 0.0
      %563 = vmatpush1.msra.mxu0 0.0
      %564 = vmatprep.subr.mxu0 0.0
      %565 = vmatpush1.msra.mxu0 0.0
      %566 = vmatprep.subr.mxu0 0.0
      %567 = vmatpush1.msra.mxu0 0.0
      %568 = vmatprep.subr.mxu0 0.0
      %569 = vmatpush1.msra.mxu0 0.0
      %570 = vmatprep.subr.mxu0 0.0
      %571 = vmatpush1.msra.mxu0 0.0
      %572 = vmatprep.subr.mxu0 0.0
      %573 = vmatpush1.msra.mxu0 0.0
      %574 = vmatprep.subr.mxu0 0.0
      %575 = vmatpush1.msra.mxu0 0.0
      %576 = vmatprep.subr.mxu0 0.0
      %577 = vmatpush1.msra.mxu0 0.0
      %578 = vmatprep.subr.mxu0 0.0
      %579 = vmatpush1.msra.mxu0 0.0
      %580 = vmatprep.subr.mxu0 0.0
      %581 = vmatpush1.msra.mxu0 0.0
      %582 = vmatprep.subr.mxu0 0.0
      %583 = vmatpush1.msra.mxu0 0.0
      %584 = vmatprep.subr.mxu0 0.0
      %585 = vmatpush1.msra.mxu0 0.0
      %586 = vmatprep.subr.mxu0 0.0
      %587 = vmatpush1.msra.mxu0 0.0
      %588 = vmatprep.mubr.f32.mxu0 0.0
      %589 = vmatmul.mubr.f32.gmra.mrb[0].mxu0 %v516
      %v590 = vpop.f32.mrb[0].mxu0
      %v591 = vadd.f32 0.0, %v590
      %v592 = vpop.f32.mrb[0].mxu0
      %v593 = vadd.f32 0.0, %v592
      %594 = vdwg.mxu0
      %v595 = vadd.f32 %v489, %v591
      %v596 = vadd.f32 %v490, %v593
      %s597 = scalar_lea.vmem %s2, 32
      %v598 = vld [vmem:[%s597] sm:$0xff]
      %v600 = vsel %vm223, %v598, 0
      %v602 = vsel %vm227, %v171, 0
      %v604 = vsel %vm227, %v174, 0
      %606 = vmatprep.subr.mxu0 %v604
      %607 = vmatpush1.msra.mxu0 %v602
      %608 = vmatprep.subr.mxu0 0.0
      %609 = vmatpush1.msra.mxu0 0.0
      %610 = vmatprep.subr.mxu0 0.0
      %611 = vmatpush1.msra.mxu0 0.0
      %612 = vmatprep.subr.mxu0 0.0
      %613 = vmatpush1.msra.mxu0 0.0
      %614 = vmatprep.subr.mxu0 0.0
      %615 = vmatpush1.msra.mxu0 0.0
      %616 = vmatprep.subr.mxu0 0.0
      %617 = vmatpush1.msra.mxu0 0.0
      %618 = vmatprep.subr.mxu0 0.0
      %619 = vmatpush1.msra.mxu0 0.0
      %620 = vmatprep.subr.mxu0 0.0
      %621 = vmatpush1.msra.mxu0 0.0
      %622 = vmatprep.subr.mxu0 0.0
      %623 = vmatpush1.msra.mxu0 0.0
      %624 = vmatprep.subr.mxu0 0.0
      %625 = vmatpush1.msra.mxu0 0.0
      %626 = vmatprep.subr.mxu0 0.0
      %627 = vmatpush1.msra.mxu0 0.0
      %628 = vmatprep.subr.mxu0 0.0
      %629 = vmatpush1.msra.mxu0 0.0
      %630 = vmatprep.subr.mxu0 0.0
      %631 = vmatpush1.msra.mxu0 0.0
      %632 = vmatprep.subr.mxu0 0.0
      %633 = vmatpush1.msra.mxu0 0.0
      %634 = vmatprep.subr.mxu0 0.0
      %635 = vmatpush1.msra.mxu0 0.0
      %636 = vmatprep.subr.mxu0 0.0
      %637 = vmatpush1.msra.mxu0 0.0
      %638 = vmatprep.subr.mxu0 0.0
      %639 = vmatpush1.msra.mxu0 0.0
      %640 = vmatprep.subr.mxu0 0.0
      %641 = vmatpush1.msra.mxu0 0.0
      %642 = vmatprep.subr.mxu0 0.0
      %643 = vmatpush1.msra.mxu0 0.0
      %644 = vmatprep.subr.mxu0 0.0
      %645 = vmatpush1.msra.mxu0 0.0
      %646 = vmatprep.subr.mxu0 0.0
      %647 = vmatpush1.msra.mxu0 0.0
      %648 = vmatprep.subr.mxu0 0.0
      %649 = vmatpush1.msra.mxu0 0.0
      %650 = vmatprep.subr.mxu0 0.0
      %651 = vmatpush1.msra.mxu0 0.0
      %652 = vmatprep.subr.mxu0 0.0
      %653 = vmatpush1.msra.mxu0 0.0
      %654 = vmatprep.subr.mxu0 0.0
      %655 = vmatpush1.msra.mxu0 0.0
      %656 = vmatprep.subr.mxu0 0.0
      %657 = vmatpush1.msra.mxu0 0.0
      %658 = vmatprep.subr.mxu0 0.0
      %659 = vmatpush1.msra.mxu0 0.0
      %660 = vmatprep.subr.mxu0 0.0
      %661 = vmatpush1.msra.mxu0 0.0
      %662 = vmatprep.subr.mxu0 0.0
      %663 = vmatpush1.msra.mxu0 0.0
      %664 = vmatprep.subr.mxu0 0.0
      %665 = vmatpush1.msra.mxu0 0.0
      %666 = vmatprep.subr.mxu0 0.0
      %667 = vmatpush1.msra.mxu0 0.0
      %668 = vmatprep.subr.mxu0 0.0
      %669 = vmatpush1.msra.mxu0 0.0
      %670 = vmatprep.mubr.f32.mxu0 0.0
      %671 = vmatmul.mubr.f32.gmra.mrb[0].mxu0 %v600
      %v672 = vpop.f32.mrb[0].mxu0
      %v673 = vadd.f32 0.0, %v672
      %v674 = vpop.f32.mrb[0].mxu0
      %v675 = vadd.f32 0.0, %v674
      %676 = vdwg.mxu0
      %v677 = vadd.f32 %v595, %v673
      %v678 = vadd.f32 %v596, %v675
      %s679 = scalar_lea.vmem %s2, 40
      %v680 = vld [vmem:[%s679] sm:$0xff]
      %681 = vrot.lane.b32.xlu0 %v171, 127
      %v682 = vpop.permute.xlu0 %681
      %683 = vrot.lane.b32.xlu0 %v174, 127
      %v684 = vpop.permute.xlu0 %683
      %vm685 = vcmp.lt.s32.totalorder %v181, 127
      %v686 = vsel %vm685, %v682, %v684
      %v687 = vsel %vm685, %v684, %v682
      %s688 = scalar_lea.vmem %s0, 10
      %v689 = vld [vmem:[%s688] sm:$0x3]
      %v691 = vlaneseq
      %v692 = vshrl.u32 %v691, 7
      %v693 = vsub.s32 0, %v692
      %v694 = vrot.slane %v689, %v693
      %v695 = vlaneseq
      %v696 = vshrl.u32 %v695, 7
      %v697 = vsub.s32 1, %v696
      %v698 = vrot.slane %v689, %v697
      %v701 = vmul.f32 %v686, %v694
      %v702 = vmul.f32 %v687, %v698
      %v704 = vsel %vm223, %v680, 0
      %v707 = vsel %vm227, %v701, 0
      %v710 = vsel %vm227, %v702, 0
      %712 = vmatprep.subr.mxu0 %v710
      %713 = vmatpush1.msra.mxu0 %v707
      %714 = vmatprep.subr.mxu0 0.0
      %715 = vmatpush1.msra.mxu0 0.0
      %716 = vmatprep.subr.mxu0 0.0
      %717 = vmatpush1.msra.mxu0 0.0
      %718 = vmatprep.subr.mxu0 0.0
      %719 = vmatpush1.msra.mxu0 0.0
      %720 = vmatprep.subr.mxu0 0.0
      %721 = vmatpush1.msra.mxu0 0.0
      %722 = vmatprep.subr.mxu0 0.0
      %723 = vmatpush1.msra.mxu0 0.0
      %724 = vmatprep.subr.mxu0 0.0
      %725 = vmatpush1.msra.mxu0 0.0
      %726 = vmatprep.subr.mxu0 0.0
      %727 = vmatpush1.msra.mxu0 0.0
      %728 = vmatprep.subr.mxu0 0.0
      %729 = vmatpush1.msra.mxu0 0.0
      %730 = vmatprep.subr.mxu0 0.0
      %731 = vmatpush1.msra.mxu0 0.0
      %732 = vmatprep.subr.mxu0 0.0
      %733 = vmatpush1.msra.mxu0 0.0
      %734 = vmatprep.subr.mxu0 0.0
      %735 = vmatpush1.msra.mxu0 0.0
      %736 = vmatprep.subr.mxu0 0.0
      %737 = vmatpush1.msra.mxu0 0.0
      %738 = vmatprep.subr.mxu0 0.0
      %739 = vmatpush1.msra.mxu0 0.0
      %740 = vmatprep.subr.mxu0 0.0
      %741 = vmatpush1.msra.mxu0 0.0
      %742 = vmatprep.subr.mxu0 0.0
      %743 = vmatpush1.msra.mxu0 0.0
      %744 = vmatprep.subr.mxu0 0.0
      %745 = vmatpush1.msra.mxu0 0.0
      %746 = vmatprep.subr.mxu0 0.0
      %747 = vmatpush1.msra.mxu0 0.0
      %748 = vmatprep.subr.mxu0 0.0
      %749 = vmatpush1.msra.mxu0 0.0
      %750 = vmatprep.subr.mxu0 0.0
      %751 = vmatpush1.msra.mxu0 0.0
      %752 = vmatprep.subr.mxu0 0.0
      %753 = vmatpush1.msra.mxu0 0.0
      %754 = vmatprep.subr.mxu0 0.0
      %755 = vmatpush1.msra.mxu0 0.0
      %756 = vmatprep.subr.mxu0 0.0
      %757 = vmatpush1.msra.mxu0 0.0
      %758 = vmatprep.subr.mxu0 0.0
      %759 = vmatpush1.msra.mxu0 0.0
      %760 = vmatprep.subr.mxu0 0.0
      %761 = vmatpush1.msra.mxu0 0.0
      %762 = vmatprep.subr.mxu0 0.0
      %763 = vmatpush1.msra.mxu0 0.0
      %764 = vmatprep.subr.mxu0 0.0
      %765 = vmatpush1.msra.mxu0 0.0
      %766 = vmatprep.subr.mxu0 0.0
      %767 = vmatpush1.msra.mxu0 0.0
      %768 = vmatprep.subr.mxu0 0.0
      %769 = vmatpush1.msra.mxu0 0.0
      %770 = vmatprep.subr.mxu0 0.0
      %771 = vmatpush1.msra.mxu0 0.0
      %772 = vmatprep.subr.mxu0 0.0
      %773 = vmatpush1.msra.mxu0 0.0
      %774 = vmatprep.subr.mxu0 0.0
      %775 = vmatpush1.msra.mxu0 0.0
      %776 = vmatprep.mubr.f32.mxu0 0.0
      %777 = vmatmul.mubr.f32.gmra.mrb[0].mxu0 %v704
      %v778 = vpop.f32.mrb[0].mxu0
      %v779 = vadd.f32 0.0, %v778
      %v780 = vpop.f32.mrb[0].mxu0
      %v781 = vadd.f32 0.0, %v780
      %782 = vdwg.mxu0
      %v783 = vadd.f32 %v677, %v779
      %v784 = vadd.f32 %v678, %v781
      %s785 = scalar_lea.vmem %s2, 48
      %v786 = vld [vmem:[%s785] sm:$0xff]
      %787 = vrot.lane.b32.xlu0 %v171, 113
      %v788 = vpop.permute.xlu0 %787
      %789 = vrot.lane.b32.xlu0 %v174, 113
      %v790 = vpop.permute.xlu0 %789
      %vm791 = vcmp.lt.s32.totalorder %v181, 113
      %v792 = vsel %vm791, %v788, %v790
      %v793 = vsel %vm791, %v790, %v788
      %s794 = scalar_lea.vmem %s0, 12
      %v795 = vld [vmem:[%s794] sm:$0x3]
      %v797 = vlaneseq
      %v798 = vshrl.u32 %v797, 7
      %v799 = vsub.s32 0, %v798
      %v800 = vrot.slane %v795, %v799
      %v801 = vlaneseq
      %v802 = vshrl.u32 %v801, 7
      %v803 = vsub.s32 1, %v802
      %v804 = vrot.slane %v795, %v803
      %v807 = vmul.f32 %v792, %v800
      %v808 = vmul.f32 %v793, %v804
      %v810 = vsel %vm223, %v786, 0
      %v813 = vsel %vm227, %v807, 0
      %v816 = vsel %vm227, %v808, 0
      %818 = vmatprep.subr.mxu0 %v816
      %819 = vmatpush1.msra.mxu0 %v813
      %820 = vmatprep.subr.mxu0 0.0
      %821 = vmatpush1.msra.mxu0 0.0
      %822 = vmatprep.subr.mxu0 0.0
      %823 = vmatpush1.msra.mxu0 0.0
      %824 = vmatprep.subr.mxu0 0.0
      %825 = vmatpush1.msra.mxu0 0.0
      %826 = vmatprep.subr.mxu0 0.0
      %827 = vmatpush1.msra.mxu0 0.0
      %828 = vmatprep.subr.mxu0 0.0
      %829 = vmatpush1.msra.mxu0 0.0
      %830 = vmatprep.subr.mxu0 0.0
      %831 = vmatpush1.msra.mxu0 0.0
      %832 = vmatprep.subr.mxu0 0.0
      %833 = vmatpush1.msra.mxu0 0.0
      %834 = vmatprep.subr.mxu0 0.0
      %835 = vmatpush1.msra.mxu0 0.0
      %836 = vmatprep.subr.mxu0 0.0
      %837 = vmatpush1.msra.mxu0 0.0
      %838 = vmatprep.subr.mxu0 0.0
      %839 = vmatpush1.msra.mxu0 0.0
      %840 = vmatprep.subr.mxu0 0.0
      %841 = vmatpush1.msra.mxu0 0.0
      %842 = vmatprep.subr.mxu0 0.0
      %843 = vmatpush1.msra.mxu0 0.0
      %844 = vmatprep.subr.mxu0 0.0
      %845 = vmatpush1.msra.mxu0 0.0
      %846 = vmatprep.subr.mxu0 0.0
      %847 = vmatpush1.msra.mxu0 0.0
      %848 = vmatprep.subr.mxu0 0.0
      %849 = vmatpush1.msra.mxu0 0.0
      %850 = vmatprep.subr.mxu0 0.0
      %851 = vmatpush1.msra.mxu0 0.0
      %852 = vmatprep.subr.mxu0 0.0
      %853 = vmatpush1.msra.mxu0 0.0
      %854 = vmatprep.subr.mxu0 0.0
      %855 = vmatpush1.msra.mxu0 0.0
      %856 = vmatprep.subr.mxu0 0.0
      %857 = vmatpush1.msra.mxu0 0.0
      %858 = vmatprep.subr.mxu0 0.0
      %859 = vmatpush1.msra.mxu0 0.0
      %860 = vmatprep.subr.mxu0 0.0
      %861 = vmatpush1.msra.mxu0 0.0
      %862 = vmatprep.subr.mxu0 0.0
      %863 = vmatpush1.msra.mxu0 0.0
      %864 = vmatprep.subr.mxu0 0.0
      %865 = vmatpush1.msra.mxu0 0.0
      %866 = vmatprep.subr.mxu0 0.0
      %867 = vmatpush1.msra.mxu0 0.0
      %868 = vmatprep.subr.mxu0 0.0
      %869 = vmatpush1.msra.mxu0 0.0
      %870 = vmatprep.subr.mxu0 0.0
      %871 = vmatpush1.msra.mxu0 0.0
      %872 = vmatprep.subr.mxu0 0.0
      %873 = vmatpush1.msra.mxu0 0.0
      %874 = vmatprep.subr.mxu0 0.0
      %875 = vmatpush1.msra.mxu0 0.0
      %876 = vmatprep.subr.mxu0 0.0
      %877 = vmatpush1.msra.mxu0 0.0
      %878 = vmatprep.subr.mxu0 0.0
      %879 = vmatpush1.msra.mxu0 0.0
      %880 = vmatprep.subr.mxu0 0.0
      %881 = vmatpush1.msra.mxu0 0.0
      %882 = vmatprep.mubr.f32.mxu0 0.0
      %883 = vmatmul.mubr.f32.gmra.mrb[0].mxu0 %v810
      %v884 = vpop.f32.mrb[0].mxu0
      %v885 = vadd.f32 0.0, %v884
      %v886 = vpop.f32.mrb[0].mxu0
      %v887 = vadd.f32 0.0, %v886
      %888 = vdwg.mxu0
      %v889 = vadd.f32 %v783, %v885
      %v890 = vadd.f32 %v784, %v887
      %s891 = scalar_lea.vmem %s2, 56
      %v892 = vld [vmem:[%s891] sm:$0xff]
      %893 = vrot.lane.b32.xlu0 %v171, 112
      %v894 = vpop.permute.xlu0 %893
      %895 = vrot.lane.b32.xlu0 %v174, 112
      %v896 = vpop.permute.xlu0 %895
      %vm897 = vcmp.lt.s32.totalorder %v181, 112
      %v898 = vsel %vm897, %v894, %v896
      %v899 = vsel %vm897, %v896, %v894
      %s900 = scalar_lea.vmem %s0, 14
      %v901 = vld [vmem:[%s900] sm:$0x3]
      %v903 = vlaneseq
      %v904 = vshrl.u32 %v903, 7
      %v905 = vsub.s32 0, %v904
      %v906 = vrot.slane %v901, %v905
      %v907 = vlaneseq
      %v908 = vshrl.u32 %v907, 7
      %v909 = vsub.s32 1, %v908
      %v910 = vrot.slane %v901, %v909
      %v913 = vmul.f32 %v898, %v906
      %v914 = vmul.f32 %v899, %v910
      %v916 = vsel %vm223, %v892, 0
      %v919 = vsel %vm227, %v913, 0
      %v922 = vsel %vm227, %v914, 0
      %924 = vmatprep.subr.mxu0 %v922
      %925 = vmatpush1.msra.mxu0 %v919
      %926 = vmatprep.subr.mxu0 0.0
      %927 = vmatpush1.msra.mxu0 0.0
      %928 = vmatprep.subr.mxu0 0.0
      %929 = vmatpush1.msra.mxu0 0.0
      %930 = vmatprep.subr.mxu0 0.0
      %931 = vmatpush1.msra.mxu0 0.0
      %932 = vmatprep.subr.mxu0 0.0
      %933 = vmatpush1.msra.mxu0 0.0
      %934 = vmatprep.subr.mxu0 0.0
      %935 = vmatpush1.msra.mxu0 0.0
      %936 = vmatprep.subr.mxu0 0.0
      %937 = vmatpush1.msra.mxu0 0.0
      %938 = vmatprep.subr.mxu0 0.0
      %939 = vmatpush1.msra.mxu0 0.0
      %940 = vmatprep.subr.mxu0 0.0
      %941 = vmatpush1.msra.mxu0 0.0
      %942 = vmatprep.subr.mxu0 0.0
      %943 = vmatpush1.msra.mxu0 0.0
      %944 = vmatprep.subr.mxu0 0.0
      %945 = vmatpush1.msra.mxu0 0.0
      %946 = vmatprep.subr.mxu0 0.0
      %947 = vmatpush1.msra.mxu0 0.0
      %948 = vmatprep.subr.mxu0 0.0
      %949 = vmatpush1.msra.mxu0 0.0
      %950 = vmatprep.subr.mxu0 0.0
      %951 = vmatpush1.msra.mxu0 0.0
      %952 = vmatprep.subr.mxu0 0.0
      %953 = vmatpush1.msra.mxu0 0.0
      %954 = vmatprep.subr.mxu0 0.0
      %955 = vmatpush1.msra.mxu0 0.0
      %956 = vmatprep.subr.mxu0 0.0
      %957 = vmatpush1.msra.mxu0 0.0
      %958 = vmatprep.subr.mxu0 0.0
      %959 = vmatpush1.msra.mxu0 0.0
      %960 = vmatprep.subr.mxu0 0.0
      %961 = vmatpush1.msra.mxu0 0.0
      %962 = vmatprep.subr.mxu0 0.0
      %963 = vmatpush1.msra.mxu0 0.0
      %964 = vmatprep.subr.mxu0 0.0
      %965 = vmatpush1.msra.mxu0 0.0
      %966 = vmatprep.subr.mxu0 0.0
      %967 = vmatpush1.msra.mxu0 0.0
      %968 = vmatprep.subr.mxu0 0.0
      %969 = vmatpush1.msra.mxu0 0.0
      %970 = vmatprep.subr.mxu0 0.0
      %971 = vmatpush1.msra.mxu0 0.0
      %972 = vmatprep.subr.mxu0 0.0
      %973 = vmatpush1.msra.mxu0 0.0
      %974 = vmatprep.subr.mxu0 0.0
      %975 = vmatpush1.msra.mxu0 0.0
      %976 = vmatprep.subr.mxu0 0.0
      %977 = vmatpush1.msra.mxu0 0.0
      %978 = vmatprep.subr.mxu0 0.0
      %979 = vmatpush1.msra.mxu0 0.0
      %980 = vmatprep.subr.mxu0 0.0
      %981 = vmatpush1.msra.mxu0 0.0
      %982 = vmatprep.subr.mxu0 0.0
      %983 = vmatpush1.msra.mxu0 0.0
      %984 = vmatprep.subr.mxu0 0.0
      %985 = vmatpush1.msra.mxu0 0.0
      %986 = vmatprep.subr.mxu0 0.0
      %987 = vmatpush1.msra.mxu0 0.0
      %988 = vmatprep.mubr.f32.mxu0 0.0
      %989 = vmatmul.mubr.f32.gmra.mrb[0].mxu0 %v916
      %v990 = vpop.f32.mrb[0].mxu0
      %v991 = vadd.f32 0.0, %v990
      %v992 = vpop.f32.mrb[0].mxu0
      %v993 = vadd.f32 0.0, %v992
      %994 = vdwg.mxu0
      %v995 = vadd.f32 %v889, %v991
      %v996 = vadd.f32 %v890, %v993
      %s997 = scalar_lea.vmem %s2, 64
      %v998 = vld [vmem:[%s997] sm:$0xff]
      %999 = vrot.lane.b32.xlu0 %v171, 111
      %v1000 = vpop.permute.xlu0 %999
      %1001 = vrot.lane.b32.xlu0 %v174, 111
      %v1002 = vpop.permute.xlu0 %1001
      %vm1003 = vcmp.lt.s32.totalorder %v181, 111
      %v1004 = vsel %vm1003, %v1000, %v1002
      %v1005 = vsel %vm1003, %v1002, %v1000
      %s1006 = scalar_lea.vmem %s0, 16
      %v1007 = vld [vmem:[%s1006] sm:$0x3]
      %v1009 = vlaneseq
      %v1010 = vshrl.u32 %v1009, 7
      %v1011 = vsub.s32 0, %v1010
      %v1012 = vrot.slane %v1007, %v1011
      %v1013 = vlaneseq
      %v1014 = vshrl.u32 %v1013, 7
      %v1015 = vsub.s32 1, %v1014
      %v1016 = vrot.slane %v1007, %v1015
      %v1019 = vmul.f32 %v1004, %v1012
      %v1020 = vmul.f32 %v1005, %v1016
      %v1022 = vsel %vm223, %v998, 0
      %v1025 = vsel %vm227, %v1019, 0
      %v1028 = vsel %vm227, %v1020, 0
      %1030 = vmatprep.subr.mxu0 %v1028
      %1031 = vmatpush1.msra.mxu0 %v1025
      %1032 = vmatprep.subr.mxu0 0.0
      %1033 = vmatpush1.msra.mxu0 0.0
      %1034 = vmatprep.subr.mxu0 0.0
      %1035 = vmatpush1.msra.mxu0 0.0
      %1036 = vmatprep.subr.mxu0 0.0
      %1037 = vmatpush1.msra.mxu0 0.0
      %1038 = vmatprep.subr.mxu0 0.0
      %1039 = vmatpush1.msra.mxu0 0.0
      %1040 = vmatprep.subr.mxu0 0.0
      %1041 = vmatpush1.msra.mxu0 0.0
      %1042 = vmatprep.subr.mxu0 0.0
      %1043 = vmatpush1.msra.mxu0 0.0
      %1044 = vmatprep.subr.mxu0 0.0
      %1045 = vmatpush1.msra.mxu0 0.0
      %1046 = vmatprep.subr.mxu0 0.0
      %1047 = vmatpush1.msra.mxu0 0.0
      %1048 = vmatprep.subr.mxu0 0.0
      %1049 = vmatpush1.msra.mxu0 0.0
      %1050 = vmatprep.subr.mxu0 0.0
      %1051 = vmatpush1.msra.mxu0 0.0
      %1052 = vmatprep.subr.mxu0 0.0
      %1053 = vmatpush1.msra.mxu0 0.0
      %1054 = vmatprep.subr.mxu0 0.0
      %1055 = vmatpush1.msra.mxu0 0.0
      %1056 = vmatprep.subr.mxu0 0.0
      %1057 = vmatpush1.msra.mxu0 0.0
      %1058 = vmatprep.subr.mxu0 0.0
      %1059 = vmatpush1.msra.mxu0 0.0
      %1060 = vmatprep.subr.mxu0 0.0
      %1061 = vmatpush1.msra.mxu0 0.0
      %1062 = vmatprep.subr.mxu0 0.0
      %1063 = vmatpush1.msra.mxu0 0.0
      %1064 = vmatprep.subr.mxu0 0.0
      %1065 = vmatpush1.msra.mxu0 0.0
      %1066 = vmatprep.subr.mxu0 0.0
      %1067 = vmatpush1.msra.mxu0 0.0
      %1068 = vmatprep.subr.mxu0 0.0
      %1069 = vmatpush1.msra.mxu0 0.0
      %1070 = vmatprep.subr.mxu0 0.0
      %1071 = vmatpush1.msra.mxu0 0.0
      %1072 = vmatprep.subr.mxu0 0.0
      %1073 = vmatpush1.msra.mxu0 0.0
      %1074 = vmatprep.subr.mxu0 0.0
      %1075 = vmatpush1.msra.mxu0 0.0
      %1076 = vmatprep.subr.mxu0 0.0
      %1077 = vmatpush1.msra.mxu0 0.0
      %1078 = vmatprep.subr.mxu0 0.0
      %1079 = vmatpush1.msra.mxu0 0.0
      %1080 = vmatprep.subr.mxu0 0.0
      %1081 = vmatpush1.msra.mxu0 0.0
      %1082 = vmatprep.subr.mxu0 0.0
      %1083 = vmatpush1.msra.mxu0 0.0
      %1084 = vmatprep.subr.mxu0 0.0
      %1085 = vmatpush1.msra.mxu0 0.0
      %1086 = vmatprep.subr.mxu0 0.0
      %1087 = vmatpush1.msra.mxu0 0.0
      %1088 = vmatprep.subr.mxu0 0.0
      %1089 = vmatpush1.msra.mxu0 0.0
      %1090 = vmatprep.subr.mxu0 0.0
      %1091 = vmatpush1.msra.mxu0 0.0
      %1092 = vmatprep.subr.mxu0 0.0
      %1093 = vmatpush1.msra.mxu0 0.0
      %1094 = vmatprep.mubr.f32.mxu0 0.0
      %1095 = vmatmul.mubr.f32.gmra.mrb[0].mxu0 %v1022
      %v1096 = vpop.f32.mrb[0].mxu0
      %v1097 = vadd.f32 0.0, %v1096
      %v1098 = vpop.f32.mrb[0].mxu0
      %v1099 = vadd.f32 0.0, %v1098
      %1100 = vdwg.mxu0
      %v1101 = vadd.f32 %v995, %v1097
      %v1102 = vadd.f32 %v996, %v1099
      %v1103 = vadd.f32 %v1101, %v1102
      %1104 = vadd.xlane.f32.xlu0 %v1103
      %v1105 = vpop.xlane.xlu0 %1104
      %v1106 = vrcp.pop 256.0
      %v1107 = vmul.f32 %v1105, %v1106
      %v1108 = vsub.f32 %v1101, %v1107
      %v1109 = vsub.f32 %v1102, %v1107
      %v1110 = vmul.f32 %v1108, %v1108
      %v1111 = vmul.f32 %v1109, %v1109
      %v1112 = vadd.f32 %v1110, %v1111
      %1113 = vadd.xlane.f32.xlu0 %v1112
      %v1114 = vpop.xlane.xlu0 %1113
      %v1115 = vmul.f32 %v1114, %v1106
      %v1116 = vadd.f32 %v1115, 1e-05
      %v1117 = vrsqrt.pop %v1116
      %v1118 = vmul.f32 %v1108, %v1117
      %v1119 = vmul.f32 %v1109, %v1117
      %vm1120 = vcmp.gt.f32.partialorder %v1118, 0.0
      %vm1121 = vcmp.gt.f32.partialorder %v1119, 0.0
      %v1122 = vmul.f32 %v1118, 0.05
      %v1123 = vmul.f32 %v1119, 0.05
      %v1124 = vsel %vm1120, %v1118, %v1122
      %v1125 = vsel %vm1121, %v1119, %v1123
      %1126 = vst [vmem:[%s170] sm:$0xff] %v1124
      %1127 = vst [vmem:[%s170 + $0x8] sm:$0xff] %v1125
      %p1128 = scmp.lt.s32.totalorder %s14, 1
      %s1129 = scalar_select %p1128, %s14, 1
      %s1130 = smul.addr %s1129, 2
      %s1131 = smul.addr %s1130, 8
      %s1132 = scalar_lea.vmem %s3, %s1131
      // Predicated region
      $region33: #{conv_bn_relu_pallas.1} parent=31 // pred_check
        %p1133 = pneg %p100
      $region34: #{conv_bn_relu_pallas.1} parent=31 // pred_check_branch
        %1135 = sbr.rel (%p1133) target = $region36
      $region35: #{conv_bn_relu_pallas.1} parent=31 // pred_region
        _
      $region36: #{conv_bn_relu_pallas.1} parent=31 // pred_fallthru
        _
    $region32: #{conv_bn_relu_pallas.1} parent=5 // pred_fallthru
      _
    %p1136 = scmp.le.s32.totalorder 2, %s9
    // Predicated region
    $region37: #{conv_bn_relu_pallas.1} parent=5 // pred_check
      %p1137 = pneg %p1136
    $region38: #{conv_bn_relu_pallas.1} parent=5 // pred_check_branch
      %1139 = sbr.rel (%p1137) target = $region40
    $region39: #{conv_bn_relu_pallas.1} parent=5 // pred_region
      %s1140 = ssub.s32 %s9, 2
      // Predicated region
      $region41: #{conv_bn_relu_pallas.1} parent=39 // pred_check
        %p1141 = pneg %p106
      $region42: #{conv_bn_relu_pallas.1} parent=39 // pred_check_branch
        %1143 = sbr.rel (%p1141) target = $region44
      $region43: #{conv_bn_relu_pallas.1} parent=39 // pred_region
        %p1144 = scmp.lt.s32.totalorder %s15, 1
        %s1145 = scalar_select %p1144, %s15, 1
        %s1146 = smul.addr %s1145, 2
        %s1147 = smul.addr %s1146, 8
        %s1148 = scalar_lea.vmem %s3, %s1147
      $region44: #{conv_bn_relu_pallas.1} parent=39 // pred_fallthru
        _
    $region40: #{conv_bn_relu_pallas.1} parent=5 // pred_fallthru
      _
  $region6: #{conv_bn_relu_pallas.1} parent=0 // loop_footer
    %s13 = sadd.s32 1, %s9
  $region7: #{conv_bn_relu_pallas.1} parent=0 // loop_footer_branch
    %8 = sbr.rel target = $region3
  $region8: #{conv_bn_relu_pallas.1} parent=0 // loop_exit
    _

</llo_original>
